<compile_context>
chip_gen: v7x
topology: tpu7x:2x2x1
jax: 0.10.0
libtpu: 0.0.40
codegen_flags: <defaults>
</compile_context>

<pallas_src>
import functools

import jax
import jax.numpy as jnp
from jax import lax
from jax.experimental import pallas as pl
from jax.experimental.pallas import tpu as pltpu


# ---------------------------------------------------------------------------
# Kernel: row-wise spatial sum of x viewed as (N*Cin, HW).
# ---------------------------------------------------------------------------
def _row_sum_kernel(x_ref, o_ref, acc_ref, *, lane_chunks, lane_rem):
    """x_ref: (TR, THW)   o_ref: (TR, 1) f32   acc_ref: (TR or 8, 128) f32.

    Grid is (row_tiles, spatial_tiles); the spatial axis is the reduction
    ("arbitrary") axis.  Steady state: lane-dense VPU adds into acc_ref.
    The single cross-lane reduce runs once per row tile in the final step.
    lane_rem > 0 only occurs when the whole HW fits in one block (n_h == 1).
    """
    h = pl.program_id(1)
    rows = x_ref.shape[0]

    if lane_chunks > 0:
        @pl.when(h == 0)
        def _():
            acc_ref[...] = jnp.zeros_like(acc_ref)

        # Pure VPU adds of aligned 128-lane slabs (no per-step XLU work).
        if lane_chunks * ((rows + 7) // 8) <= 4096:
            for k in range(lane_chunks):
                acc_ref[...] += x_ref[:, k * 128:(k + 1) * 128].astype(jnp.float32)
        else:
            def body(k, carry):
                off = pl.multiple_of(k * 128, 128)
                acc_ref[...] += x_ref[:, pl.ds(off, 128)].astype(jnp.float32)
                return carry
            lax.fori_loop(0, lane_chunks, body, 0)

    @pl.when(h == pl.num_programs(1) - 1)
    def _():
        if lane_chunks > 0:
            s = jnp.sum(acc_ref[...], axis=-1, keepdims=True)
            if lane_rem > 0:
                # Ragged tail exists only when THW == HW (single spatial step).
                s = s + jnp.sum(
                    x_ref[:, lane_chunks * 128:].astype(jnp.float32),
                    axis=-1, keepdims=True)
        else:
            # HW < 128: one cheap lane reduce per tile (no steady-state loop).
            s = jnp.sum(x_ref[...].astype(jnp.float32), axis=-1, keepdims=True)
        o_ref[...] = s.astype(o_ref.dtype)


# ---------------------------------------------------------------------------
# Generation-aware tile / VMEM sizing.
# ---------------------------------------------------------------------------
def _vmem_physical_bytes():
    try:
        info = pltpu.get_tpu_info()
        for attr in ("vmem_capacity_bytes", "vmem_bytes", "vmem_size_bytes"):
            v = getattr(info, attr, None)
            if v:
                return int(v)
    except Exception:
        pass
    try:
        kind = jax.devices()[0].device_kind.lower()
    except Exception:
        kind = ""
    if "v7" in kind or "7x" in kind:
        return 64 << 20
    if "v2" in kind or "v3" in kind:
        return 16 << 20
    return 128 << 20


def _pad(n, m):
    return ((n + m - 1) // m) * m


def _pick_tiles(R, HW, itemsize, buffers_budget):
    """Choose (TR, THW, n_buf_x) for x blocked as (TR, THW) over (R, HW).

    Only exact divisors are used (no ragged blocks -> no garbage in the sum)
    and every VMEM consumer is counted: the n_buf x buffers (lane/sublane
    padded), the double-buffered (TR,1) output blocks (each padded to a full
    vreg column) and the (TR,128) accumulator scratch.
    """
    sub = {4: 8, 2: 16, 1: 32}.get(itemsize, 8)

    def x_buf(tr, thw):
        return _pad(tr, sub) * _pad(thw, 128) * itemsize

    def vmem_use(tr, thw, n_buf):
        use = n_buf * x_buf(tr, thw)
        use += 2 * _pad(tr, 8) * 128 * 4                 # (TR,1) f32 out, 2 buffers
        acc_rows = tr if thw >= 128 else 8
        use += _pad(acc_rows, 8) * 128 * 4               # accumulator scratch
        return use

    row_cands = sorted({d for d in range(sub, R + 1, sub) if R % d == 0} | {R})
    if len(row_cands) > 256:                              # keep trace-time search cheap
        step = len(row_cands) / 256.0
        row_cands = sorted({row_cands[int(i * step)] for i in range(256)}
                           | {row_cands[-1]})

    if HW % 128 == 0 and HW > 128:
        hw_cands = [k * 128 for k in range(1, HW // 128 + 1) if HW % (k * 128) == 0]
    else:
        hw_cands = [HW]                                   # full width, single spatial step

    floor = 4 << 20        # per-step DMA target: amortizes ~0.35us/step overhead
    best = None
    for tr in row_cands:
        for thw in hw_cands:
            if vmem_use(tr, thw, 2) > buffers_budget:
                continue
            n_row = R // tr
            n_h = HW // thw
            dma = tr * thw * itemsize
            score = (
                1 if n_row >= 2 else 0,    # let the parallel axis span both v7x cores
                min(dma, floor),           # reach the per-step DMA floor
                -(n_row * n_h),            # then: fewer grid steps
                dma,                       # then: bigger tiles
            )
            if best is None or score > best[0]:
                best = (score, tr, thw)

    if best is None:
        # Nothing fits the budget (pathological shapes): smallest legal config.
        tr, thw = min(row_cands), min(hw_cands)
    else:
        tr, thw = best[1], best[2]

    n_h = HW // thw
    n_buf_x = 2
    if n_h >= 2 and vmem_use(tr, thw, 3) <= buffers_budget:
        # The x DMA is strided (stride HW) when the spatial axis is tiled; a
        # third buffer smooths strided-DMA jitter at small VMEM cost.
        n_buf_x = 3
    return tr, thw, n_buf_x


# ---------------------------------------------------------------------------
# Forward wrapper.
# ---------------------------------------------------------------------------
def _fold_bn(gamma, beta, mean, var, eps=1e-5):
    scale = gamma / jnp.sqrt(var + eps)
    bias = beta - mean * scale
    return scale, bias


def conv1x1_forward(x_nchw, w_oi, bn1, bn2):
    """x_nchw: (N, Cin, H, W).  w_oi: (Cout, Cin) 1x1-conv weight.
    bn1, bn2: dicts with gamma/beta/mean/var, each of shape (Cout,)."""
    N, Cin, H, W = x_nchw.shape
    Cout = w_oi.shape[0]
    HW = H * W
    R = N * Cin

    # Free view of contiguous NCHW: (N*Cin, HW) -- no transpose pass over HBM.
    x = x_nchw.reshape(R, HW)
    itemsize = jnp.dtype(x.dtype).itemsize

    # Generation-aware VMEM cap (v7x: 64 MiB physical; v5e/v6e/v4: 128 MiB).
    phys = _vmem_physical_bytes()
    if phys >= (128 << 20):
        total_cap = 64 << 20
    elif phys >= (64 << 20):
        total_cap = 44 << 20
    else:
        total_cap = max(phys // 2, 8 << 20)
    buffers_budget = max(total_cap - (6 << 20), total_cap // 2)  # internal-scratch headroom

    TR, THW, n_buf_x = _pick_tiles(R, HW, itemsize, buffers_budget)
    n_row, n_h = R // TR, HW // THW
    lane_chunks, lane_rem = THW // 128, THW % 128
    assert lane_rem == 0 or n_h == 1
    acc_rows = TR if lane_chunks > 0 else 8

    kernel = functools.partial(
        _row_sum_kernel, lane_chunks=lane_chunks, lane_rem=lane_rem)

    if n_buf_x > 2:
        x_spec = pl.BlockSpec((TR, THW), lambda r, h: (r, h),
                              pipeline_mode=pl.Buffered(n_buf_x))
    else:
        x_spec = pl.BlockSpec((TR, THW), lambda r, h: (r, h))

    sums = pl.pallas_call(
        kernel,
        out_shape=jax.ShapeDtypeStruct((R, 1), jnp.float32),
        grid_spec=pltpu.PrefetchScalarGridSpec(
            num_scalar_prefetch=0,
            grid=(n_row, n_h),
            in_specs=[x_spec],
            out_specs=pl.BlockSpec((TR, 1), lambda r, h: (r, 0)),
            scratch_shapes=[pltpu.VMEM((acc_rows, 128), jnp.float32)],
        ),
        compiler_params=pltpu.CompilerParams(
            dimension_semantics=("parallel", "arbitrary"),
            vmem_limit_bytes=int(total_cap),
        ),
        cost_estimate=pl.CostEstimate(
            flops=int(R * HW),
            transcendentals=0,
            bytes_accessed=int(R * HW * itemsize + R * 4),
        ),
    )(x)

    # Fold both BatchNorms and the 1/HW of the mean into the tiny deferred
    # matmul; this O(N*Cin*Cout) dot is negligible next to streaming x once.
    s1, b1 = _fold_bn(bn1["gamma"], bn1["beta"], bn1["mean"], bn1["var"])
    s2, b2 = _fold_bn(bn2["gamma"], bn2["beta"], bn2["mean"], bn2["var"])
    scale = s1 * s2                                           # (Cout,)
    bias = b1 * s2 + b2                                       # (Cout,)
    w_eff = (w_oi.astype(jnp.float32) * scale[:, None]).T * (1.0 / HW)   # (Cin, Cout)

    pooled = sums.reshape(N, Cin)
    out = jnp.dot(pooled, w_eff, precision=jax.lax.Precision.HIGHEST,
                  preferred_element_type=jnp.float32)
    return out + bias[None, :]


def _reference(x_nchw, w_oi, bn1, bn2):
    # pure-JAX reference mirroring the PyTorch module (eval-mode BN)
    y = jnp.einsum("nchw,oc->nohw", x_nchw, w_oi,
                   precision=jax.lax.Precision.HIGHEST)
    s1, b1 = _fold_bn(bn1["gamma"], bn1["beta"], bn1["mean"], bn1["var"])
    s2, b2 = _fold_bn(bn2["gamma"], bn2["beta"], bn2["mean"], bn2["var"])
    y = y * s1[None, :, None, None] + b1[None, :, None, None]
    y = y * s2[None, :, None, None] + b2[None, :, None, None]
    return jnp.mean(y, axis=(2, 3))


if __name__ == "__main__":
    key = jax.random.PRNGKey(0)
    N, Cin, Cout, H, W = 2, 4, 8, 16, 16

    k_x, k_w, k_g1, k_b1, k_m1, k_v1, k_g2, k_b2, k_m2, k_v2 = jax.random.split(key, 10)
    x = jax.random.normal(k_x, (N, Cin, H, W), dtype=jnp.float32)
    # deterministic synthetic parameters (matching nn.Conv2d / nn.BatchNorm2d shapes)
    w = jax.random.normal(k_w, (Cout, Cin), dtype=jnp.float32) * 0.1
    bn1 = dict(
        gamma=1.0 + 0.1 * jax.random.normal(k_g1, (Cout,), dtype=jnp.float32),
        beta=0.1 * jax.random.normal(k_b1, (Cout,), dtype=jnp.float32),
        mean=0.05 * jax.random.normal(k_m1, (Cout,), dtype=jnp.float32),
        var=1.0 + 0.1 * jax.random.uniform(k_v1, (Cout,), dtype=jnp.float32),
    )
    bn2 = dict(
        gamma=1.0 + 0.1 * jax.random.normal(k_g2, (Cout,), dtype=jnp.float32),
        beta=0.1 * jax.random.normal(k_b2, (Cout,), dtype=jnp.float32),
        mean=0.05 * jax.random.normal(k_m2, (Cout,), dtype=jnp.float32),
        var=1.0 + 0.1 * jax.random.uniform(k_v2, (Cout,), dtype=jnp.float32),
    )

    fwd = jax.jit(conv1x1_forward)
    out = fwd(x, w, bn1, bn2)
    out = jax.block_until_ready(out)

    ref = _reference(x, w, bn1, bn2)
    assert out.shape == (N, Cout)
    assert jnp.allclose(out, ref, atol=1e-5, rtol=1e-5), "mismatch vs reference"

    print("KERNEL_OK")
</pallas_src>

<mosaic_0001>
module attributes {stable_mosaic.version = 11 : i64} {
  func.func @_row_sum_kernel(%arg0: i32, %arg1: i32, %arg2: memref<8x256xf32, #tpu.memory_space<vmem>>, %arg3: memref<8x1xf32, #tpu.memory_space<vmem>>, %arg4: memref<8x128xf32, #tpu.memory_space<vmem>>) attributes {dimension_semantics = [#tpu.dimension_semantics<parallel>, #tpu.dimension_semantics<arbitrary>], iteration_bounds = array<i64: 1, 1>, scalar_prefetch = 0 : i64, scratch_operands = 1 : i64, tpu.core_type = #tpu.core_type<tc>, window_params = [{transform_indices = @transform_0, window_bounds = array<i64: 8, 256>}, {transform_indices = @transform_1, window_bounds = array<i64: 8, 1>}]} {
    %c0_i32 = arith.constant 0 : i32
    %0 = arith.cmpi eq, %arg1, %c0_i32 : i32
    %1 = arith.extui %0 : i1 to i32
    %c0_i32_0 = arith.constant 0 : i32
    %2 = arith.cmpi ne, %1, %c0_i32_0 : i32
    scf.if %2 {
      %cst = arith.constant 0.000000e+00 : f32
      %14 = vector.broadcast %cst : f32 to vector<8x128xf32>
      %c0_13 = arith.constant 0 : index
      %c0_14 = arith.constant 0 : index
      %15 = vector.load %arg4[%c0_13, %c0_14] : memref<8x128xf32, #tpu.memory_space<vmem>>, vector<8x128xf32>
      tpu.vector_store %arg4[%c0_13, %c0_14], %14 {strides = array<i32>} : memref<8x128xf32, #tpu.memory_space<vmem>>, vector<8x128xf32>,
    } else {
    }
    %c0 = arith.constant 0 : index
    %c0_1 = arith.constant 0 : index
    %3 = vector.load %arg4[%c0, %c0_1] : memref<8x128xf32, #tpu.memory_space<vmem>>, vector<8x128xf32>
    %c0_2 = arith.constant 0 : index
    %c0_3 = arith.constant 0 : index
    %4 = vector.load %arg2[%c0_2, %c0_3] : memref<8x256xf32, #tpu.memory_space<vmem>>, vector<8x128xf32>
    %5 = arith.addf %3, %4 : vector<8x128xf32>
    %c0_4 = arith.constant 0 : index
    %c0_5 = arith.constant 0 : index
    %6 = vector.load %arg4[%c0_4, %c0_5] : memref<8x128xf32, #tpu.memory_space<vmem>>, vector<8x128xf32>
    tpu.vector_store %arg4[%c0_4, %c0_5], %5 {strides = array<i32>} : memref<8x128xf32, #tpu.memory_space<vmem>>, vector<8x128xf32>,
    %c0_6 = arith.constant 0 : index
    %c0_7 = arith.constant 0 : index
    %7 = vector.load %arg4[%c0_6, %c0_7] : memref<8x128xf32, #tpu.memory_space<vmem>>, vector<8x128xf32>
    %c0_8 = arith.constant 0 : index
    %c128 = arith.constant 128 : index
    %8 = vector.load %arg2[%c0_8, %c128] : memref<8x256xf32, #tpu.memory_space<vmem>>, vector<8x128xf32>
    %9 = arith.addf %7, %8 : vector<8x128xf32>
    %c0_9 = arith.constant 0 : index
    %c0_10 = arith.constant 0 : index
    %10 = vector.load %arg4[%c0_9, %c0_10] : memref<8x128xf32, #tpu.memory_space<vmem>>, vector<8x128xf32>
    tpu.vector_store %arg4[%c0_9, %c0_10], %9 {strides = array<i32>} : memref<8x128xf32, #tpu.memory_space<vmem>>, vector<8x128xf32>,
    %c0_i32_11 = arith.constant 0 : i32
    %11 = arith.cmpi eq, %arg1, %c0_i32_11 : i32
    %12 = arith.extui %11 : i1 to i32
    %c0_i32_12 = arith.constant 0 : i32
    %13 = arith.cmpi ne, %12, %c0_i32_12 : i32
    scf.if %13 {
      %c0_13 = arith.constant 0 : index
      %c0_14 = arith.constant 0 : index
      %14 = vector.load %arg4[%c0_13, %c0_14] : memref<8x128xf32, #tpu.memory_space<vmem>>, vector<8x128xf32>
      %cst = arith.constant dense<0.000000e+00> : vector<8xf32>
      %15 = vector.multi_reduction <add>, %14, %cst [1] : vector<8x128xf32> to vector<8xf32>
      %16 = vector.shape_cast %15 : vector<8xf32> to vector<8x1xf32>
      %c0_15 = arith.constant 0 : index
      %c0_16 = arith.constant 0 : index
      %17 = vector.load %arg3[%c0_15, %c0_16] : memref<8x1xf32, #tpu.memory_space<vmem>>, vector<8x1xf32>
      tpu.vector_store %arg3[%c0_15, %c0_16], %16 {strides = array<i32>} : memref<8x1xf32, #tpu.memory_space<vmem>>, vector<8x1xf32>,
    } else {
    }
    return
  }
  func.func @transform_0(%arg0: i32, %arg1: i32) -> (i32, i32) {
    %c0_i32 = arith.constant 0 : i32
    return %arg0, %arg1 : i32, i32
  }
  func.func @transform_1(%arg0: i32, %arg1: i32) -> (i32, i32) {
    %c0_i32 = arith.constant 0 : i32
    %c0_i32_0 = arith.constant 0 : i32
    return %arg0, %c0_i32 : i32, i32
  }
}

</mosaic_0001>

<llo_original>
// kernel: conv1x1_forward.1
$region0: #{conv1x1_forward.1}
  #allocation0 [shape = 'u32[]', space=smem, size = 0x4, offset = 0x4, fixed_abs, tag = 'smem constant byte address 0x4 - core index']
  #allocation1 [shape = 'u32[144,128]{1,0:T(1,128)}', space=vmem, size = 0x12000, scoped, tag = 'internal scratch']
  #allocation2 [shape = 'f32[8,128]{1,0:T(8,128)}', space=vmem, size = 0x1000, scoped, tag = 'scratch operand']
  %s0 = inlined_call_operand.hbm [shape: f32[8,256], index: 0, kind: input, shape index: {}]
  %s1 = inlined_call_operand.hbm [shape: f32[8,1], index: 1, kind: output, shape index: {}]
  %s2 = sld [smem:[#allocation0]]
  $region26: #{conv1x1_forward.1} parent=0
    _
  %s4 = ssub.s32 1, %s2
  %s5 = scalar_select 0, %s4, %s2
  $region1: #{conv1x1_forward.1} parent=0
    #allocation3 [shape = 'u8[8192]{0}', space=vmem, size = 0x2000, scoped, tag = 'input window, operand 0, single buffered']
    #allocation4 [shape = 's32[1]{0}', space=sflag, size = 0x4, scoped, tag = 'scoped memory for conv1x1_forward.1']
    #allocation5 [shape = 's32[1]{0}', space=sflag, size = 0x4, scoped, tag = 'scoped memory for conv1x1_forward.1']
    #allocation6 [shape = 'u8[4096]{0}', space=vmem, size = 0x1000, scoped, tag = 'output window, operand 0, single buffered']
    %6 = vsyncpa [#allocation4], 0
    %7 = vsyncpa [#allocation5], 0
    // Predicated region
    $region2: #{conv1x1_forward.1} parent=1 // pred_check
      _
    $region3: #{conv1x1_forward.1} parent=1 // pred_check_branch
      %9 = sbr.rel (0) target = $region5
    $region4: #{conv1x1_forward.1} parent=1 // pred_region
      %s11 = ssub.s32 256, 256
      %12 = vsyncadd [#allocation4], %s11
      %s14 = sshll.u32 [#allocation3], 4
      %s15 = int_to_ptr.vmem [resolvable:$true] %s14
      %17 = dma.hbm_to_vmem [thread:$0]  %s0, 256, %s15, [#allocation4]
    $region5: #{conv1x1_forward.1} parent=1 // pred_fallthru
      _
    // Predicated region
    $region6: #{conv1x1_forward.1} parent=1 // pred_check
      _
    $region7: #{conv1x1_forward.1} parent=1 // pred_check_branch
      %19 = sbr.rel (0) target = $region9
    $region8: #{conv1x1_forward.1} parent=1 // pred_region
      %20 = dma.done [#allocation4], 256
    $region9: #{conv1x1_forward.1} parent=1 // pred_fallthru
      _
    %p21 = scmp.eq.s32.totalorder 0, 0
    // Predicated region
    $region10: #{conv1x1_forward.1} parent=1 // pred_check
      %p22 = pneg %p21
    $region11: #{conv1x1_forward.1} parent=1 // pred_check_branch
      %24 = sbr.rel (%p22) target = $region13
    $region12: #{conv1x1_forward.1} parent=1 // pred_region
      %25 = vst [vmem:[#allocation2] sm:$0xff] 0.0
    $region13: #{conv1x1_forward.1} parent=1 // pred_fallthru
      _
    %v26 = vld [vmem:[#allocation2] sm:$0xff]
    %v27 = vld [vmem:[#allocation3] sm:$0xff]
    %v28 = vadd.f32 %v26, %v27
    %29 = vst [vmem:[#allocation2] sm:$0xff] %v28
    %v30 = vld [vmem:[#allocation2] sm:$0xff]
    %v31 = vld [vmem:[#allocation3 + $0x8] sm:$0xff]
    %v32 = vadd.f32 %v30, %v31
    %33 = vst [vmem:[#allocation2] sm:$0xff] %v32
    // Predicated region
    $region14: #{conv1x1_forward.1} parent=1 // pred_check
      %p34 = pneg %p21
    $region15: #{conv1x1_forward.1} parent=1 // pred_check_branch
      %36 = sbr.rel (%p34) target = $region17
    $region16: #{conv1x1_forward.1} parent=1 // pred_region
      %v37 = vld [vmem:[#allocation2] sm:$0xff]
      %38 = vadd.xlane.f32.xlu0 %v37
      %v39 = vpop.xlane.xlu0 %38
      %vm40 = vcmask 7168
      %41 = vst.msk [vmem:[#allocation6] sm:$0xff] %vm40, %v39
    $region17: #{conv1x1_forward.1} parent=1 // pred_fallthru
      _
    // Predicated region
    $region18: #{conv1x1_forward.1} parent=1 // pred_check
      _
    $region19: #{conv1x1_forward.1} parent=1 // pred_check_branch
      %43 = sbr.rel (0) target = $region21
    $region20: #{conv1x1_forward.1} parent=1 // pred_region
      %s45 = ssub.s32 128, 128
      %46 = vsyncadd [#allocation5], %s45
      %s48 = sshll.u32 [#allocation6], 4
      %s49 = int_to_ptr.vmem [resolvable:$true] %s48
      %51 = dma.vmem_to_hbm [thread:$0]  %s49, 128, %s1, [#allocation5]
    $region21: #{conv1x1_forward.1} parent=1 // pred_fallthru
      _
    // Predicated region
    $region22: #{conv1x1_forward.1} parent=1 // pred_check
      _
    $region23: #{conv1x1_forward.1} parent=1 // pred_check_branch
      %53 = sbr.rel (0) target = $region25
    $region24: #{conv1x1_forward.1} parent=1 // pred_region
      %54 = dma.done [#allocation5], 128
    $region25: #{conv1x1_forward.1} parent=1 // pred_fallthru
      _
    %55 = vsyncpa [#allocation4], 1
    %56 = vsyncpa [#allocation5], 1

</llo_original>
